<compile_context>
chip_gen: v5e
topology: v5e:2x2
jax: 0.10.0
libtpu: 0.0.40
codegen_flags: <defaults>
</compile_context>

<pallas_src>
import jax
import jax.numpy as jnp
from jax.experimental import pallas as pl
from jax.experimental.pallas import tpu as pltpu

EPS = 1e-5


def _make_kernel(B, C, N):
    inv_nm1 = 1.0 / (N - 1)          # unbiased ContextNorm variance divisor
    bn_scale = (N - 1.0) / (B * N)   # converts sum_b var_cn/(var_cn+eps) -> biased BN var

    def kernel(x_ref, w1_ref, g1_ref, bb1_ref, w2_ref, g2_ref, bb2_ref, out_ref):
        x_in = x_ref[...]                                   # (B, C, N) f32

        def conv1x1(x, w_ref):
            # Conv1d(kernel_size=1): y[b,o,n] = sum_c W[o,c] x[b,c,n]
            # (conv bias cancels under the following ContextNorm -> omitted)
            wb = jnp.broadcast_to(w_ref[...][None], (B, C, C))
            return jnp.einsum('bok,bkn->bon', wb, x,
                              preferred_element_type=jnp.float32)

        def cn_bn_relu(h, g_ref, bb_ref):
            g = g_ref[...]                                   # (1, C, 1)
            bb = bb_ref[...]                                 # (1, C, 1)
            # ContextNorm stats: per-(b, c) over the N positions, unbiased var.
            mean = jnp.mean(h, axis=2, keepdims=True)        # (B, C, 1)
            centered = h - mean                              # (B, C, N)  pass 1
            var = jnp.sum(centered * centered, axis=2,
                          keepdims=True) * inv_nm1           # (B, C, 1)
            r_cn = jax.lax.rsqrt(var + EPS)                  # (B, C, 1)  tiny EUP work
            # Fused BatchNorm (train): BN mean == 0 after CN; biased BN variance
            # per channel from the (B, C) CN stats only.
            var_bn = jnp.sum(var * (r_cn * r_cn), axis=0,
                             keepdims=True) * bn_scale       # (1, C, 1)
            scale = g * jax.lax.rsqrt(var_bn + EPS) * r_cn   # (B, C, 1)
            # single fused scale/shift + ReLU pass over the (B, C, N) slab
            return jnp.maximum(centered * scale + bb, 0.0)   # pass 2

        h = cn_bn_relu(conv1x1(x_in, w1_ref), g1_ref, bb1_ref)
        h = cn_bn_relu(conv1x1(h, w2_ref), g2_ref, bb2_ref)
        out_ref[...] = h + x_in                              # residual

    return kernel


@jax.jit
def resnet_block_pallas(x, w1, b1, g1, bb1, w2, b2, g2, bb2):
    """x: (B, C, N) float32 (PyTorch NCW). Returns (B, C, N)."""
    B, C, N = x.shape
    del b1, b2  # Conv1d bias is a no-op under ContextNorm (removed by mean subtraction)

    col = lambda v: v.reshape(1, C, 1).astype(jnp.float32)

    vmem = pl.BlockSpec(memory_space=pltpu.MemorySpace.VMEM)
    cost = pl.CostEstimate(
        flops=int(2 * (2 * C * C * B * N) + 12 * B * C * N),
        transcendentals=int(2 * (B * C + C)),
        bytes_accessed=int((2 * B * C * N + 2 * C * C + 4 * C) * 4),
    )

    return pl.pallas_call(
        _make_kernel(B, C, N),
        out_shape=jax.ShapeDtypeStruct((B, C, N), jnp.float32),
        in_specs=[vmem] * 7,
        out_specs=vmem,
        cost_estimate=cost,
    )(x.astype(jnp.float32), w1.astype(jnp.float32), col(g1), col(bb1),
      w2.astype(jnp.float32), col(g2), col(bb2))


def resnet_block_ref(x, w1, b1, g1, bb1, w2, b2, g2, bb2):
    """Pure-JAX reference of the PyTorch forward (training-mode BN)."""
    def cn(h):
        mean = jnp.mean(h, axis=2, keepdims=True)
        var = jnp.var(h, axis=2, ddof=1, keepdims=True)       # torch.var: unbiased
        return (h - mean) / jnp.sqrt(var + EPS)

    def bn(h, g, b):
        mean = jnp.mean(h, axis=(0, 2), keepdims=True)
        var = jnp.var(h, axis=(0, 2), keepdims=True)           # biased (train mode)
        return g[None, :, None] * (h - mean) / jnp.sqrt(var + EPS) + b[None, :, None]

    def conv(h, w, b):
        return jnp.einsum('oc,bcn->bon', w, h) + b[None, :, None]

    h = jnp.maximum(bn(cn(conv(x, w1, b1)), g1, bb1), 0.0)
    h = jnp.maximum(bn(cn(conv(h, w2, b2)), g2, bb2), 0.0)
    return h + x


if __name__ == "__main__":
    B, hidden, N = 2, 32, 128

    key = jax.random.PRNGKey(0)
    kx, k1, k2, k3, k4, k5, k6, k7, k8 = jax.random.split(key, 9)

    x = jax.random.normal(kx, (B, hidden, N), dtype=jnp.float32)

    # deterministic synthetic parameters (shapes from nn.Conv1d / nn.BatchNorm1d)
    w1 = 0.1 * jax.random.normal(k1, (hidden, hidden), dtype=jnp.float32)
    b1 = 0.1 * jax.random.normal(k2, (hidden,), dtype=jnp.float32)
    w2 = 0.1 * jax.random.normal(k3, (hidden, hidden), dtype=jnp.float32)
    b2 = 0.1 * jax.random.normal(k4, (hidden,), dtype=jnp.float32)
    g1 = 1.0 + 0.1 * jax.random.normal(k5, (hidden,), dtype=jnp.float32)
    bb1 = 0.1 * jax.random.normal(k6, (hidden,), dtype=jnp.float32)
    g2 = 1.0 + 0.1 * jax.random.normal(k7, (hidden,), dtype=jnp.float32)
    bb2 = 0.1 * jax.random.normal(k8, (hidden,), dtype=jnp.float32)

    out = resnet_block_pallas(x, w1, b1, g1, bb1, w2, b2, g2, bb2)
    out = jax.block_until_ready(out)

    ref = resnet_block_ref(x, w1, b1, g1, bb1, w2, b2, g2, bb2)
    max_err = float(jnp.max(jnp.abs(out - ref)))
    assert out.shape == (B, hidden, N)
    assert max_err < 1e-2, f"mismatch vs reference: max abs err = {max_err}"

    print("KERNEL_OK")
</pallas_src>

<mosaic_0001>
module attributes {stable_mosaic.version = 11 : i64} {
  func.func @kernel(%arg0: memref<2x32x128xf32, #tpu.memory_space<vmem>>, %arg1: memref<32x32xf32, #tpu.memory_space<vmem>>, %arg2: memref<1x32x1xf32, #tpu.memory_space<vmem>>, %arg3: memref<1x32x1xf32, #tpu.memory_space<vmem>>, %arg4: memref<32x32xf32, #tpu.memory_space<vmem>>, %arg5: memref<1x32x1xf32, #tpu.memory_space<vmem>>, %arg6: memref<1x32x1xf32, #tpu.memory_space<vmem>>, %arg7: memref<2x32x128xf32, #tpu.memory_space<vmem>>) attributes {dimension_semantics = [], scalar_prefetch = 0 : i64, scratch_operands = 0 : i64, tpu.core_type = #tpu.core_type<tc>} {
    %c0 = arith.constant 0 : index
    %c0_0 = arith.constant 0 : index
    %c0_1 = arith.constant 0 : index
    %0 = vector.load %arg0[%c0, %c0_0, %c0_1] : memref<2x32x128xf32, #tpu.memory_space<vmem>>, vector<2x32x128xf32>
    %c0_2 = arith.constant 0 : index
    %c0_3 = arith.constant 0 : index
    %1 = vector.load %arg1[%c0_2, %c0_3] : memref<32x32xf32, #tpu.memory_space<vmem>>, vector<32x32xf32>
    %2 = vector.shape_cast %1 : vector<32x32xf32> to vector<1x32x32xf32>
    %3 = vector.shape_cast %2 : vector<1x32x32xf32> to vector<1x32x32xf32>
    %4 = vector.broadcast %3 : vector<1x32x32xf32> to vector<2x32x32xf32>
    "tpu.trace_start"() <{level = 10 : i32, message = "bok,bkn->bon"}> : () -> ()
    %cst = arith.constant dense<0.000000e+00> : vector<2x32x128xf32>
    %5 = tpu.matmul %4, %0, %cst {dimension_numbers = #tpu.dot_dimension_numbers<[2], [1], [1], [2], [0, 0, 0, 1, 1, 2], [0], [0]>} : vector<2x32x32xf32>, vector<2x32x128xf32>, vector<2x32x128xf32> -> vector<2x32x128xf32>
    "tpu.trace_stop"() : () -> ()
    %c0_4 = arith.constant 0 : index
    %c0_5 = arith.constant 0 : index
    %c0_6 = arith.constant 0 : index
    %6 = vector.load %arg2[%c0_4, %c0_5, %c0_6] : memref<1x32x1xf32, #tpu.memory_space<vmem>>, vector<1x32x1xf32>
    %c0_7 = arith.constant 0 : index
    %c0_8 = arith.constant 0 : index
    %c0_9 = arith.constant 0 : index
    %7 = vector.load %arg3[%c0_7, %c0_8, %c0_9] : memref<1x32x1xf32, #tpu.memory_space<vmem>>, vector<1x32x1xf32>
    %cst_10 = arith.constant dense<0.000000e+00> : vector<2x32xf32>
    %8 = vector.multi_reduction <add>, %5, %cst_10 [2] : vector<2x32x128xf32> to vector<2x32xf32>
    %9 = vector.shape_cast %8 : vector<2x32xf32> to vector<2x32x1xf32>
    %cst_11 = arith.constant 1.280000e+02 : f32
    %10 = vector.broadcast %cst_11 : f32 to vector<2x32x1xf32>
    %11 = arith.divf %9, %10 : vector<2x32x1xf32>
    %12 = vector.broadcast %11 : vector<2x32x1xf32> to vector<2x32x128xf32>
    %13 = arith.subf %5, %12 : vector<2x32x128xf32>
    %14 = arith.mulf %13, %13 : vector<2x32x128xf32>
    %cst_12 = arith.constant dense<0.000000e+00> : vector<2x32xf32>
    %15 = vector.multi_reduction <add>, %14, %cst_12 [2] : vector<2x32x128xf32> to vector<2x32xf32>
    %16 = vector.shape_cast %15 : vector<2x32xf32> to vector<2x32x1xf32>
    %cst_13 = arith.constant 0.00787401571 : f32
    %17 = vector.broadcast %cst_13 : f32 to vector<2x32x1xf32>
    %18 = arith.mulf %16, %17 : vector<2x32x1xf32>
    %cst_14 = arith.constant 9.99999974E-6 : f32
    %19 = vector.broadcast %cst_14 : f32 to vector<2x32x1xf32>
    %20 = arith.addf %18, %19 : vector<2x32x1xf32>
    %21 = math.rsqrt %20 : vector<2x32x1xf32>
    %22 = arith.mulf %21, %21 : vector<2x32x1xf32>
    %23 = arith.mulf %18, %22 : vector<2x32x1xf32>
    %cst_15 = arith.constant dense<0.000000e+00> : vector<32x1xf32>
    %24 = vector.multi_reduction <add>, %23, %cst_15 [0] : vector<2x32x1xf32> to vector<32x1xf32>
    %25 = vector.shape_cast %24 : vector<32x1xf32> to vector<1x32x1xf32>
    %cst_16 = arith.constant 0.49609375 : f32
    %26 = vector.broadcast %cst_16 : f32 to vector<1x32x1xf32>
    %27 = arith.mulf %25, %26 : vector<1x32x1xf32>
    %cst_17 = arith.constant 9.99999974E-6 : f32
    %28 = vector.broadcast %cst_17 : f32 to vector<1x32x1xf32>
    %29 = arith.addf %27, %28 : vector<1x32x1xf32>
    %30 = math.rsqrt %29 : vector<1x32x1xf32>
    %31 = arith.mulf %6, %30 : vector<1x32x1xf32>
    %32 = vector.broadcast %31 : vector<1x32x1xf32> to vector<2x32x1xf32>
    %33 = arith.mulf %32, %21 : vector<2x32x1xf32>
    %34 = vector.broadcast %33 : vector<2x32x1xf32> to vector<2x32x128xf32>
    %35 = arith.mulf %13, %34 : vector<2x32x128xf32>
    %36 = vector.broadcast %7 : vector<1x32x1xf32> to vector<2x32x128xf32>
    %37 = arith.addf %35, %36 : vector<2x32x128xf32>
    %cst_18 = arith.constant 0.000000e+00 : f32
    %38 = vector.broadcast %cst_18 : f32 to vector<2x32x128xf32>
    %39 = arith.maximumf %37, %38 : vector<2x32x128xf32>
    %c0_19 = arith.constant 0 : index
    %c0_20 = arith.constant 0 : index
    %40 = vector.load %arg4[%c0_19, %c0_20] : memref<32x32xf32, #tpu.memory_space<vmem>>, vector<32x32xf32>
    %41 = vector.shape_cast %40 : vector<32x32xf32> to vector<1x32x32xf32>
    %42 = vector.shape_cast %41 : vector<1x32x32xf32> to vector<1x32x32xf32>
    %43 = vector.broadcast %42 : vector<1x32x32xf32> to vector<2x32x32xf32>
    "tpu.trace_start"() <{level = 10 : i32, message = "bok,bkn->bon"}> : () -> ()
    %cst_21 = arith.constant dense<0.000000e+00> : vector<2x32x128xf32>
    %44 = tpu.matmul %43, %39, %cst_21 {dimension_numbers = #tpu.dot_dimension_numbers<[2], [1], [1], [2], [0, 0, 0, 1, 1, 2], [0], [0]>} : vector<2x32x32xf32>, vector<2x32x128xf32>, vector<2x32x128xf32> -> vector<2x32x128xf32>
    "tpu.trace_stop"() : () -> ()
    %c0_22 = arith.constant 0 : index
    %c0_23 = arith.constant 0 : index
    %c0_24 = arith.constant 0 : index
    %45 = vector.load %arg5[%c0_22, %c0_23, %c0_24] : memref<1x32x1xf32, #tpu.memory_space<vmem>>, vector<1x32x1xf32>
    %c0_25 = arith.constant 0 : index
    %c0_26 = arith.constant 0 : index
    %c0_27 = arith.constant 0 : index
    %46 = vector.load %arg6[%c0_25, %c0_26, %c0_27] : memref<1x32x1xf32, #tpu.memory_space<vmem>>, vector<1x32x1xf32>
    %cst_28 = arith.constant dense<0.000000e+00> : vector<2x32xf32>
    %47 = vector.multi_reduction <add>, %44, %cst_28 [2] : vector<2x32x128xf32> to vector<2x32xf32>
    %48 = vector.shape_cast %47 : vector<2x32xf32> to vector<2x32x1xf32>
    %cst_29 = arith.constant 1.280000e+02 : f32
    %49 = vector.broadcast %cst_29 : f32 to vector<2x32x1xf32>
    %50 = arith.divf %48, %49 : vector<2x32x1xf32>
    %51 = vector.broadcast %50 : vector<2x32x1xf32> to vector<2x32x128xf32>
    %52 = arith.subf %44, %51 : vector<2x32x128xf32>
    %53 = arith.mulf %52, %52 : vector<2x32x128xf32>
    %cst_30 = arith.constant dense<0.000000e+00> : vector<2x32xf32>
    %54 = vector.multi_reduction <add>, %53, %cst_30 [2] : vector<2x32x128xf32> to vector<2x32xf32>
    %55 = vector.shape_cast %54 : vector<2x32xf32> to vector<2x32x1xf32>
    %cst_31 = arith.constant 0.00787401571 : f32
    %56 = vector.broadcast %cst_31 : f32 to vector<2x32x1xf32>
    %57 = arith.mulf %55, %56 : vector<2x32x1xf32>
    %cst_32 = arith.constant 9.99999974E-6 : f32
    %58 = vector.broadcast %cst_32 : f32 to vector<2x32x1xf32>
    %59 = arith.addf %57, %58 : vector<2x32x1xf32>
    %60 = math.rsqrt %59 : vector<2x32x1xf32>
    %61 = arith.mulf %60, %60 : vector<2x32x1xf32>
    %62 = arith.mulf %57, %61 : vector<2x32x1xf32>
    %cst_33 = arith.constant dense<0.000000e+00> : vector<32x1xf32>
    %63 = vector.multi_reduction <add>, %62, %cst_33 [0] : vector<2x32x1xf32> to vector<32x1xf32>
    %64 = vector.shape_cast %63 : vector<32x1xf32> to vector<1x32x1xf32>
    %cst_34 = arith.constant 0.49609375 : f32
    %65 = vector.broadcast %cst_34 : f32 to vector<1x32x1xf32>
    %66 = arith.mulf %64, %65 : vector<1x32x1xf32>
    %cst_35 = arith.constant 9.99999974E-6 : f32
    %67 = vector.broadcast %cst_35 : f32 to vector<1x32x1xf32>
    %68 = arith.addf %66, %67 : vector<1x32x1xf32>
    %69 = math.rsqrt %68 : vector<1x32x1xf32>
    %70 = arith.mulf %45, %69 : vector<1x32x1xf32>
    %71 = vector.broadcast %70 : vector<1x32x1xf32> to vector<2x32x1xf32>
    %72 = arith.mulf %71, %60 : vector<2x32x1xf32>
    %73 = vector.broadcast %72 : vector<2x32x1xf32> to vector<2x32x128xf32>
    %74 = arith.mulf %52, %73 : vector<2x32x128xf32>
    %75 = vector.broadcast %46 : vector<1x32x1xf32> to vector<2x32x128xf32>
    %76 = arith.addf %74, %75 : vector<2x32x128xf32>
    %cst_36 = arith.constant 0.000000e+00 : f32
    %77 = vector.broadcast %cst_36 : f32 to vector<2x32x128xf32>
    %78 = arith.maximumf %76, %77 : vector<2x32x128xf32>
    %79 = arith.addf %78, %0 : vector<2x32x128xf32>
    %c0_37 = arith.constant 0 : index
    %c0_38 = arith.constant 0 : index
    %c0_39 = arith.constant 0 : index
    %80 = vector.load %arg7[%c0_37, %c0_38, %c0_39] : memref<2x32x128xf32, #tpu.memory_space<vmem>>, vector<2x32x128xf32>
    tpu.vector_store %arg7[%c0_37, %c0_38, %c0_39], %79 {strides = array<i32>} : memref<2x32x128xf32, #tpu.memory_space<vmem>>, vector<2x32x128xf32>,
    return
  }
}

</mosaic_0001>

<llo_original>
// kernel: resnet_block_pallas.1
$region0: #{resnet_block_pallas.1}
  #allocation0 [shape = 'u32[]', space=smem, size = 0x4, offset = 0x4, fixed_abs, tag = 'smem constant byte address 0x4 - core index']
  #allocation1 [shape = 'u32[72,128]{1,0:T(1,128)}', space=vmem, size = 0x9000, scoped, tag = 'internal scratch']
  %s0 = inlined_call_operand.vmem [shape: f32[2,32,128], index: 0, kind: input, shape index: {}]
  %s1 = inlined_call_operand.vmem [shape: f32[32,32], index: 1, kind: input, shape index: {}]
  %s2 = inlined_call_operand.vmem [shape: f32[1,32,1], index: 2, kind: input, shape index: {}]
  %s3 = inlined_call_operand.vmem [shape: f32[1,32,1], index: 3, kind: input, shape index: {}]
  %s4 = inlined_call_operand.vmem [shape: f32[32,32], index: 4, kind: input, shape index: {}]
  %s5 = inlined_call_operand.vmem [shape: f32[1,32,1], index: 5, kind: input, shape index: {}]
  %s6 = inlined_call_operand.vmem [shape: f32[1,32,1], index: 6, kind: input, shape index: {}]
  %s7 = inlined_call_operand.hbm [shape: f32[2,32,128], index: 7, kind: output, shape index: {}]
  %s8 = sld [smem:[#allocation0]]
  $region38: #{resnet_block_pallas.1} parent=0
    _
  %s10 = ssub.s32 1, %s8
  %s11 = scalar_select 0, %s10, %s8
  $region1: #{resnet_block_pallas.1} parent=0
    #allocation2 [shape = 'u8[32768]{0}', space=vmem, size = 0x8000, scoped, tag = 'output window, operand 0, single buffered']
    #allocation3 [shape = 's32[1]{0}', space=sflag, size = 0x4, scoped, tag = 'scoped memory for resnet_block_pallas.1']
    %12 = vsyncpa [#allocation3], 0
    // Predicated region
    $region2: #{resnet_block_pallas.1} parent=1 // pred_check
      _
    $region3: #{resnet_block_pallas.1} parent=1 // pred_check_branch
      %14 = sbr.rel (0) target = $region5
    $region4: #{resnet_block_pallas.1} parent=1 // pred_region
      _
    $region5: #{resnet_block_pallas.1} parent=1 // pred_fallthru
      _
    // Predicated region
    $region6: #{resnet_block_pallas.1} parent=1 // pred_check
      _
    $region7: #{resnet_block_pallas.1} parent=1 // pred_check_branch
      %16 = sbr.rel (0) target = $region9
    $region8: #{resnet_block_pallas.1} parent=1 // pred_region
      _
    $region9: #{resnet_block_pallas.1} parent=1 // pred_fallthru
      _
    // Predicated region
    $region10: #{resnet_block_pallas.1} parent=1 // pred_check
      _
    $region11: #{resnet_block_pallas.1} parent=1 // pred_check_branch
      %18 = sbr.rel (0) target = $region13
    $region12: #{resnet_block_pallas.1} parent=1 // pred_region
      _
    $region13: #{resnet_block_pallas.1} parent=1 // pred_fallthru
      _
    // Predicated region
    $region14: #{resnet_block_pallas.1} parent=1 // pred_check
      _
    $region15: #{resnet_block_pallas.1} parent=1 // pred_check_branch
      %20 = sbr.rel (0) target = $region17
    $region16: #{resnet_block_pallas.1} parent=1 // pred_region
      _
    $region17: #{resnet_block_pallas.1} parent=1 // pred_fallthru
      _
    // Predicated region
    $region18: #{resnet_block_pallas.1} parent=1 // pred_check
      _
    $region19: #{resnet_block_pallas.1} parent=1 // pred_check_branch
      %22 = sbr.rel (0) target = $region21
    $region20: #{resnet_block_pallas.1} parent=1 // pred_region
      _
    $region21: #{resnet_block_pallas.1} parent=1 // pred_fallthru
      _
    // Predicated region
    $region22: #{resnet_block_pallas.1} parent=1 // pred_check
      _
    $region23: #{resnet_block_pallas.1} parent=1 // pred_check_branch
      %24 = sbr.rel (0) target = $region25
    $region24: #{resnet_block_pallas.1} parent=1 // pred_region
      _
    $region25: #{resnet_block_pallas.1} parent=1 // pred_fallthru
      _
    // Predicated region
    $region26: #{resnet_block_pallas.1} parent=1 // pred_check
      _
    $region27: #{resnet_block_pallas.1} parent=1 // pred_check_branch
      %26 = sbr.rel (0) target = $region29
    $region28: #{resnet_block_pallas.1} parent=1 // pred_region
      _
    $region29: #{resnet_block_pallas.1} parent=1 // pred_fallthru
      _
    %v27 = vld [vmem:[%s0] sm:$0xff]
    %v28 = vld [vmem:[%s0 + $0x8] sm:$0xff]
    %v29 = vld [vmem:[%s0 + $0x10] sm:$0xff]
    %v30 = vld [vmem:[%s0 + $0x18] sm:$0xff]
    %v31 = vld [vmem:[%s0 + $0x20] sm:$0xff]
    %v32 = vld [vmem:[%s0 + $0x28] sm:$0xff]
    %v33 = vld [vmem:[%s0 + $0x30] sm:$0xff]
    %v34 = vld [vmem:[%s0 + $0x38] sm:$0xff]
    %v35 = vld [vmem:[%s1] sm:$0xff]
    %v36 = vld [vmem:[%s1 + $0x8] sm:$0xff]
    %v37 = vld [vmem:[%s1 + $0x10] sm:$0xff]
    %v38 = vld [vmem:[%s1 + $0x18] sm:$0xff]
    %vm39 = vcmask 261120
    %v41 = vsel %vm39, %v35, 0
    %v44 = vsel %vm39, %v36, 0
    %v47 = vsel %vm39, %v37, 0
    %v50 = vsel %vm39, %v38, 0
    %52 = vmatpush.msra.mxu0 0.0
    %53 = vmatpush.msra.mxu0 0.0
    %54 = vmatpush.msra.mxu0 0.0
    %55 = vmatpush.msra.mxu0 0.0
    %56 = vmatpush.msra.mxu0 0.0
    %57 = vmatpush.msra.mxu0 0.0
    %58 = vmatpush.msra.mxu0 0.0
    %59 = vmatpush.msra.mxu0 0.0
    %60 = vmatpush.msra.mxu0 0.0
    %61 = vmatpush.msra.mxu0 0.0
    %62 = vmatpush.msra.mxu0 0.0
    %63 = vmatpush.msra.mxu0 0.0
    %64 = vmatpush.msra.mxu0 %v30
    %65 = vmatpush.msra.mxu0 %v29
    %66 = vmatpush.msra.mxu0 %v28
    %67 = vmatpush.msra.mxu0 %v27
    %68 = vmatmul.f32.gmra.mxu0 %v41
    %v69 = vpop.f32.mrf.mxu0
    %v70 = vadd.f32 0.0, %v69
    %71 = vmatmul.f32.gmra.mxu0 %v44
    %v72 = vpop.f32.mrf.mxu0
    %v73 = vadd.f32 0.0, %v72
    %74 = vmatmul.f32.gmra.mxu0 %v47
    %v75 = vpop.f32.mrf.mxu0
    %v76 = vadd.f32 0.0, %v75
    %77 = vmatmul.f32.gmra.mxu0 %v50
    %v78 = vpop.f32.mrf.mxu0
    %v79 = vadd.f32 0.0, %v78
    %80 = vdwg.mxu0
    %81 = vmatpush.msra.mxu0 0.0
    %82 = vmatpush.msra.mxu0 0.0
    %83 = vmatpush.msra.mxu0 0.0
    %84 = vmatpush.msra.mxu0 0.0
    %85 = vmatpush.msra.mxu0 0.0
    %86 = vmatpush.msra.mxu0 0.0
    %87 = vmatpush.msra.mxu0 0.0
    %88 = vmatpush.msra.mxu0 0.0
    %89 = vmatpush.msra.mxu0 0.0
    %90 = vmatpush.msra.mxu0 0.0
    %91 = vmatpush.msra.mxu0 0.0
    %92 = vmatpush.msra.mxu0 0.0
    %93 = vmatpush.msra.mxu0 %v34
    %94 = vmatpush.msra.mxu0 %v33
    %95 = vmatpush.msra.mxu0 %v32
    %96 = vmatpush.msra.mxu0 %v31
    %97 = vmatmul.f32.gmra.mxu0 %v41
    %v98 = vpop.f32.mrf.mxu0
    %v99 = vadd.f32 0.0, %v98
    %100 = vmatmul.f32.gmra.mxu0 %v44
    %v101 = vpop.f32.mrf.mxu0
    %v102 = vadd.f32 0.0, %v101
    %103 = vmatmul.f32.gmra.mxu0 %v47
    %v104 = vpop.f32.mrf.mxu0
    %v105 = vadd.f32 0.0, %v104
    %106 = vmatmul.f32.gmra.mxu0 %v50
    %v107 = vpop.f32.mrf.mxu0
    %v108 = vadd.f32 0.0, %v107
    %109 = vdwg.mxu0
    %v110 = vld [vmem:[%s2] sm:$0xff]
    %v111 = vld [vmem:[%s2 + $0x8] sm:$0xff]
    %v112 = vld [vmem:[%s2 + $0x10] sm:$0xff]
    %v113 = vld [vmem:[%s2 + $0x18] sm:$0xff]
    %v114 = vld [vmem:[%s3] sm:$0xff]
    %v115 = vld [vmem:[%s3 + $0x8] sm:$0xff]
    %v116 = vld [vmem:[%s3 + $0x10] sm:$0xff]
    %v117 = vld [vmem:[%s3 + $0x18] sm:$0xff]
    %118 = vadd.xlane.f32.xlu0 %v70
    %v119 = vpop.xlane.xlu0 %118
    %120 = vadd.xlane.f32.xlu0 %v73
    %v121 = vpop.xlane.xlu0 %120
    %122 = vadd.xlane.f32.xlu0 %v76
    %v123 = vpop.xlane.xlu0 %122
    %124 = vadd.xlane.f32.xlu0 %v79
    %v125 = vpop.xlane.xlu0 %124
    %126 = vadd.xlane.f32.xlu0 %v99
    %v127 = vpop.xlane.xlu0 %126
    %128 = vadd.xlane.f32.xlu0 %v102
    %v129 = vpop.xlane.xlu0 %128
    %130 = vadd.xlane.f32.xlu0 %v105
    %v131 = vpop.xlane.xlu0 %130
    %132 = vadd.xlane.f32.xlu0 %v108
    %v133 = vpop.xlane.xlu0 %132
    %v134 = vrcp.pop 128.0
    %v135 = vmul.f32 128.0, %v134
    %v136 = vsub.f32 1.0, %v135
    %v137 = vmul.f32 %v134, %v136
    %v138 = vadd.f32 %v134, %v137
    %vm139 = vweird.f32 %v134
    %v140 = vsel %vm139, %v134, %v138
    %v141 = vmul.f32 %v119, %v140
    %v142 = vmul.f32 %v121, %v140
    %v143 = vmul.f32 %v123, %v140
    %v144 = vmul.f32 %v125, %v140
    %v145 = vmul.f32 %v127, %v140
    %v146 = vmul.f32 %v129, %v140
    %v147 = vmul.f32 %v131, %v140
    %v148 = vmul.f32 %v133, %v140
    %v149 = vsub.f32 %v70, %v141
    %v150 = vsub.f32 %v73, %v142
    %v151 = vsub.f32 %v76, %v143
    %v152 = vsub.f32 %v79, %v144
    %v153 = vsub.f32 %v99, %v145
    %v154 = vsub.f32 %v102, %v146
    %v155 = vsub.f32 %v105, %v147
    %v156 = vsub.f32 %v108, %v148
    %v157 = vmul.f32 %v149, %v149
    %v158 = vmul.f32 %v150, %v150
    %v159 = vmul.f32 %v151, %v151
    %v160 = vmul.f32 %v152, %v152
    %v161 = vmul.f32 %v153, %v153
    %v162 = vmul.f32 %v154, %v154
    %v163 = vmul.f32 %v155, %v155
    %v164 = vmul.f32 %v156, %v156
    %165 = vadd.xlane.f32.xlu0 %v157
    %v166 = vpop.xlane.xlu0 %165
    %167 = vadd.xlane.f32.xlu0 %v158
    %v168 = vpop.xlane.xlu0 %167
    %169 = vadd.xlane.f32.xlu0 %v159
    %v170 = vpop.xlane.xlu0 %169
    %171 = vadd.xlane.f32.xlu0 %v160
    %v172 = vpop.xlane.xlu0 %171
    %173 = vadd.xlane.f32.xlu0 %v161
    %v174 = vpop.xlane.xlu0 %173
    %175 = vadd.xlane.f32.xlu0 %v162
    %v176 = vpop.xlane.xlu0 %175
    %177 = vadd.xlane.f32.xlu0 %v163
    %v178 = vpop.xlane.xlu0 %177
    %179 = vadd.xlane.f32.xlu0 %v164
    %v180 = vpop.xlane.xlu0 %179
    %v181 = vmul.f32 %v166, 0.007874016
    %v182 = vmul.f32 %v168, 0.007874016
    %v183 = vmul.f32 %v170, 0.007874016
    %v184 = vmul.f32 %v172, 0.007874016
    %v185 = vmul.f32 %v174, 0.007874016
    %v186 = vmul.f32 %v176, 0.007874016
    %v187 = vmul.f32 %v178, 0.007874016
    %v188 = vmul.f32 %v180, 0.007874016
    %v189 = vadd.f32 %v181, 1e-05
    %v190 = vadd.f32 %v182, 1e-05
    %v191 = vadd.f32 %v183, 1e-05
    %v192 = vadd.f32 %v184, 1e-05
    %v193 = vadd.f32 %v185, 1e-05
    %v194 = vadd.f32 %v186, 1e-05
    %v195 = vadd.f32 %v187, 1e-05
    %v196 = vadd.f32 %v188, 1e-05
    %v197 = vrsqrt.pop %v189
    %v198 = vmul.f32 %v197, %v189
    %v199 = vmul.f32 %v198, %v197
    %v200 = vmul.f32 0.5, %v199
    %v201 = vsub.f32 1.5, %v200
    %v202 = vmul.f32 %v197, %v201
    %vm203 = vweird.f32 %v189
    %vm204 = vweird.f32 %v197
    %vm205 = vmor %vm203, %vm204
    %v206 = vsel %vm205, %v197, %v202
    %v207 = vrsqrt.pop %v190
    %v208 = vmul.f32 %v207, %v190
    %v209 = vmul.f32 %v208, %v207
    %v210 = vmul.f32 0.5, %v209
    %v211 = vsub.f32 1.5, %v210
    %v212 = vmul.f32 %v207, %v211
    %vm213 = vweird.f32 %v190
    %vm214 = vweird.f32 %v207
    %vm215 = vmor %vm213, %vm214
    %v216 = vsel %vm215, %v207, %v212
    %v217 = vrsqrt.pop %v191
    %v218 = vmul.f32 %v217, %v191
    %v219 = vmul.f32 %v218, %v217
    %v220 = vmul.f32 0.5, %v219
    %v221 = vsub.f32 1.5, %v220
    %v222 = vmul.f32 %v217, %v221
    %vm223 = vweird.f32 %v191
    %vm224 = vweird.f32 %v217
    %vm225 = vmor %vm223, %vm224
    %v226 = vsel %vm225, %v217, %v222
    %v227 = vrsqrt.pop %v192
    %v228 = vmul.f32 %v227, %v192
    %v229 = vmul.f32 %v228, %v227
    %v230 = vmul.f32 0.5, %v229
    %v231 = vsub.f32 1.5, %v230
    %v232 = vmul.f32 %v227, %v231
    %vm233 = vweird.f32 %v192
    %vm234 = vweird.f32 %v227
    %vm235 = vmor %vm233, %vm234
    %v236 = vsel %vm235, %v227, %v232
    %v237 = vrsqrt.pop %v193
    %v238 = vmul.f32 %v237, %v193
    %v239 = vmul.f32 %v238, %v237
    %v240 = vmul.f32 0.5, %v239
    %v241 = vsub.f32 1.5, %v240
    %v242 = vmul.f32 %v237, %v241
    %vm243 = vweird.f32 %v193
    %vm244 = vweird.f32 %v237
    %vm245 = vmor %vm243, %vm244
    %v246 = vsel %vm245, %v237, %v242
    %v247 = vrsqrt.pop %v194
    %v248 = vmul.f32 %v247, %v194
    %v249 = vmul.f32 %v248, %v247
    %v250 = vmul.f32 0.5, %v249
    %v251 = vsub.f32 1.5, %v250
    %v252 = vmul.f32 %v247, %v251
    %vm253 = vweird.f32 %v194
    %vm254 = vweird.f32 %v247
    %vm255 = vmor %vm253, %vm254
    %v256 = vsel %vm255, %v247, %v252
    %v257 = vrsqrt.pop %v195
    %v258 = vmul.f32 %v257, %v195
    %v259 = vmul.f32 %v258, %v257
    %v260 = vmul.f32 0.5, %v259
    %v261 = vsub.f32 1.5, %v260
    %v262 = vmul.f32 %v257, %v261
    %vm263 = vweird.f32 %v195
    %vm264 = vweird.f32 %v257
    %vm265 = vmor %vm263, %vm264
    %v266 = vsel %vm265, %v257, %v262
    %v267 = vrsqrt.pop %v196
    %v268 = vmul.f32 %v267, %v196
    %v269 = vmul.f32 %v268, %v267
    %v270 = vmul.f32 0.5, %v269
    %v271 = vsub.f32 1.5, %v270
    %v272 = vmul.f32 %v267, %v271
    %vm273 = vweird.f32 %v196
    %vm274 = vweird.f32 %v267
    %vm275 = vmor %vm273, %vm274
    %v276 = vsel %vm275, %v267, %v272
    %v277 = vmul.f32 %v206, %v206
    %v278 = vmul.f32 %v216, %v216
    %v279 = vmul.f32 %v226, %v226
    %v280 = vmul.f32 %v236, %v236
    %v281 = vmul.f32 %v246, %v246
    %v282 = vmul.f32 %v256, %v256
    %v283 = vmul.f32 %v266, %v266
    %v284 = vmul.f32 %v276, %v276
    %v285 = vmul.f32 %v181, %v277
    %v286 = vmul.f32 %v182, %v278
    %v287 = vmul.f32 %v183, %v279
    %v288 = vmul.f32 %v184, %v280
    %v289 = vmul.f32 %v185, %v281
    %v290 = vmul.f32 %v186, %v282
    %v291 = vmul.f32 %v187, %v283
    %v292 = vmul.f32 %v188, %v284
    %v293 = vadd.f32 %v285, %v289
    %v294 = vadd.f32 %v286, %v290
    %v295 = vadd.f32 %v287, %v291
    %v296 = vadd.f32 %v288, %v292
    %v297 = vmul.f32 %v293, 0.49609375
    %v298 = vmul.f32 %v294, 0.49609375
    %v299 = vmul.f32 %v295, 0.49609375
    %v300 = vmul.f32 %v296, 0.49609375
    %v301 = vadd.f32 %v297, 1e-05
    %v302 = vadd.f32 %v298, 1e-05
    %v303 = vadd.f32 %v299, 1e-05
    %v304 = vadd.f32 %v300, 1e-05
    %v305 = vrsqrt.pop %v301
    %v306 = vmul.f32 %v305, %v301
    %v307 = vmul.f32 %v306, %v305
    %v308 = vmul.f32 0.5, %v307
    %v309 = vsub.f32 1.5, %v308
    %v310 = vmul.f32 %v305, %v309
    %vm311 = vweird.f32 %v301
    %vm312 = vweird.f32 %v305
    %vm313 = vmor %vm311, %vm312
    %v314 = vsel %vm313, %v305, %v310
    %v315 = vrsqrt.pop %v302
    %v316 = vmul.f32 %v315, %v302
    %v317 = vmul.f32 %v316, %v315
    %v318 = vmul.f32 0.5, %v317
    %v319 = vsub.f32 1.5, %v318
    %v320 = vmul.f32 %v315, %v319
    %vm321 = vweird.f32 %v302
    %vm322 = vweird.f32 %v315
    %vm323 = vmor %vm321, %vm322
    %v324 = vsel %vm323, %v315, %v320
    %v325 = vrsqrt.pop %v303
    %v326 = vmul.f32 %v325, %v303
    %v327 = vmul.f32 %v326, %v325
    %v328 = vmul.f32 0.5, %v327
    %v329 = vsub.f32 1.5, %v328
    %v330 = vmul.f32 %v325, %v329
    %vm331 = vweird.f32 %v303
    %vm332 = vweird.f32 %v325
    %vm333 = vmor %vm331, %vm332
    %v334 = vsel %vm333, %v325, %v330
    %v335 = vrsqrt.pop %v304
    %v336 = vmul.f32 %v335, %v304
    %v337 = vmul.f32 %v336, %v335
    %v338 = vmul.f32 0.5, %v337
    %v339 = vsub.f32 1.5, %v338
    %v340 = vmul.f32 %v335, %v339
    %vm341 = vweird.f32 %v304
    %vm342 = vweird.f32 %v335
    %vm343 = vmor %vm341, %vm342
    %v344 = vsel %vm343, %v335, %v340
    %v345 = vmul.f32 %v110, %v314
    %v346 = vmul.f32 %v111, %v324
    %v347 = vmul.f32 %v112, %v334
    %v348 = vmul.f32 %v113, %v344
    %v349 = vmul.f32 %v345, %v206
    %v350 = vmul.f32 %v346, %v216
    %v351 = vmul.f32 %v347, %v226
    %v352 = vmul.f32 %v348, %v236
    %v353 = vmul.f32 %v345, %v246
    %v354 = vmul.f32 %v346, %v256
    %v355 = vmul.f32 %v347, %v266
    %v356 = vmul.f32 %v348, %v276
    %358 = vset.pattern.permute.xlu0 0
    %359 = vperm.xlu0 %358, %v349
    %v360 = vpop.permute.xlu0 %359
    %363 = vset.pattern.permute.xlu0 0
    %364 = vperm.xlu0 %363, %v350
    %v365 = vpop.permute.xlu0 %364
    %368 = vset.pattern.permute.xlu0 0
    %369 = vperm.xlu0 %368, %v351
    %v370 = vpop.permute.xlu0 %369
    %373 = vset.pattern.permute.xlu0 0
    %374 = vperm.xlu0 %373, %v352
    %v375 = vpop.permute.xlu0 %374
    %378 = vset.pattern.permute.xlu0 0
    %379 = vperm.xlu0 %378, %v353
    %v380 = vpop.permute.xlu0 %379
    %383 = vset.pattern.permute.xlu0 0
    %384 = vperm.xlu0 %383, %v354
    %v385 = vpop.permute.xlu0 %384
    %388 = vset.pattern.permute.xlu0 0
    %389 = vperm.xlu0 %388, %v355
    %v390 = vpop.permute.xlu0 %389
    %393 = vset.pattern.permute.xlu0 0
    %394 = vperm.xlu0 %393, %v356
    %v395 = vpop.permute.xlu0 %394
    %v397 = vmul.f32 %v149, %v360
    %v398 = vmul.f32 %v150, %v365
    %v399 = vmul.f32 %v151, %v370
    %v400 = vmul.f32 %v152, %v375
    %v401 = vmul.f32 %v153, %v380
    %v402 = vmul.f32 %v154, %v385
    %v403 = vmul.f32 %v155, %v390
    %v404 = vmul.f32 %v156, %v395
    %406 = vset.pattern.permute.xlu0 0
    %407 = vperm.xlu0 %406, %v114
    %v408 = vpop.permute.xlu0 %407
    %411 = vset.pattern.permute.xlu0 0
    %412 = vperm.xlu0 %411, %v115
    %v413 = vpop.permute.xlu0 %412
    %416 = vset.pattern.permute.xlu0 0
    %417 = vperm.xlu0 %416, %v116
    %v418 = vpop.permute.xlu0 %417
    %421 = vset.pattern.permute.xlu0 0
    %422 = vperm.xlu0 %421, %v117
    %v423 = vpop.permute.xlu0 %422
    %v425 = vadd.f32 %v397, %v408
    %v426 = vadd.f32 %v398, %v413
    %v427 = vadd.f32 %v399, %v418
    %v428 = vadd.f32 %v400, %v423
    %v429 = vadd.f32 %v401, %v408
    %v430 = vadd.f32 %v402, %v413
    %v431 = vadd.f32 %v403, %v418
    %v432 = vadd.f32 %v404, %v423
    %v433 = vmax.f32 %v425, 0.0
    %v434 = vmax.f32 %v426, 0.0
    %v435 = vmax.f32 %v427, 0.0
    %v436 = vmax.f32 %v428, 0.0
    %v437 = vmax.f32 %v429, 0.0
    %v438 = vmax.f32 %v430, 0.0
    %v439 = vmax.f32 %v431, 0.0
    %v440 = vmax.f32 %v432, 0.0
    %v441 = vld [vmem:[%s4] sm:$0xff]
    %v442 = vld [vmem:[%s4 + $0x8] sm:$0xff]
    %v443 = vld [vmem:[%s4 + $0x10] sm:$0xff]
    %v444 = vld [vmem:[%s4 + $0x18] sm:$0xff]
    %v446 = vsel %vm39, %v441, 0
    %v449 = vsel %vm39, %v442, 0
    %v452 = vsel %vm39, %v443, 0
    %v455 = vsel %vm39, %v444, 0
    %457 = vmatpush.msra.mxu0 0.0
    %458 = vmatpush.msra.mxu0 0.0
    %459 = vmatpush.msra.mxu0 0.0
    %460 = vmatpush.msra.mxu0 0.0
    %461 = vmatpush.msra.mxu0 0.0
    %462 = vmatpush.msra.mxu0 0.0
    %463 = vmatpush.msra.mxu0 0.0
    %464 = vmatpush.msra.mxu0 0.0
    %465 = vmatpush.msra.mxu0 0.0
    %466 = vmatpush.msra.mxu0 0.0
    %467 = vmatpush.msra.mxu0 0.0
    %468 = vmatpush.msra.mxu0 0.0
    %469 = vmatpush.msra.mxu0 %v436
    %470 = vmatpush.msra.mxu0 %v435
    %471 = vmatpush.msra.mxu0 %v434
    %472 = vmatpush.msra.mxu0 %v433
    %473 = vmatmul.f32.gmra.mxu0 %v446
    %v474 = vpop.f32.mrf.mxu0
    %v475 = vadd.f32 0.0, %v474
    %476 = vmatmul.f32.gmra.mxu0 %v449
    %v477 = vpop.f32.mrf.mxu0
    %v478 = vadd.f32 0.0, %v477
    %479 = vmatmul.f32.gmra.mxu0 %v452
    %v480 = vpop.f32.mrf.mxu0
    %v481 = vadd.f32 0.0, %v480
    %482 = vmatmul.f32.gmra.mxu0 %v455
    %v483 = vpop.f32.mrf.mxu0
    %v484 = vadd.f32 0.0, %v483
    %485 = vdwg.mxu0
    %486 = vmatpush.msra.mxu0 0.0
    %487 = vmatpush.msra.mxu0 0.0
    %488 = vmatpush.msra.mxu0 0.0
    %489 = vmatpush.msra.mxu0 0.0
    %490 = vmatpush.msra.mxu0 0.0
    %491 = vmatpush.msra.mxu0 0.0
    %492 = vmatpush.msra.mxu0 0.0
    %493 = vmatpush.msra.mxu0 0.0
    %494 = vmatpush.msra.mxu0 0.0
    %495 = vmatpush.msra.mxu0 0.0
    %496 = vmatpush.msra.mxu0 0.0
    %497 = vmatpush.msra.mxu0 0.0
    %498 = vmatpush.msra.mxu0 %v440
    %499 = vmatpush.msra.mxu0 %v439
    %500 = vmatpush.msra.mxu0 %v438
    %501 = vmatpush.msra.mxu0 %v437
    %502 = vmatmul.f32.gmra.mxu0 %v446
    %v503 = vpop.f32.mrf.mxu0
    %v504 = vadd.f32 0.0, %v503
    %505 = vmatmul.f32.gmra.mxu0 %v449
    %v506 = vpop.f32.mrf.mxu0
    %v507 = vadd.f32 0.0, %v506
    %508 = vmatmul.f32.gmra.mxu0 %v452
    %v509 = vpop.f32.mrf.mxu0
    %v510 = vadd.f32 0.0, %v509
    %511 = vmatmul.f32.gmra.mxu0 %v455
    %v512 = vpop.f32.mrf.mxu0
    %v513 = vadd.f32 0.0, %v512
    %514 = vdwg.mxu0
    %v515 = vld [vmem:[%s5] sm:$0xff]
    %v516 = vld [vmem:[%s5 + $0x8] sm:$0xff]
    %v517 = vld [vmem:[%s5 + $0x10] sm:$0xff]
    %v518 = vld [vmem:[%s5 + $0x18] sm:$0xff]
    %v519 = vld [vmem:[%s6] sm:$0xff]
    %v520 = vld [vmem:[%s6 + $0x8] sm:$0xff]
    %v521 = vld [vmem:[%s6 + $0x10] sm:$0xff]
    %v522 = vld [vmem:[%s6 + $0x18] sm:$0xff]
    %523 = vadd.xlane.f32.xlu0 %v475
    %v524 = vpop.xlane.xlu0 %523
    %525 = vadd.xlane.f32.xlu0 %v478
    %v526 = vpop.xlane.xlu0 %525
    %527 = vadd.xlane.f32.xlu0 %v481
    %v528 = vpop.xlane.xlu0 %527
    %529 = vadd.xlane.f32.xlu0 %v484
    %v530 = vpop.xlane.xlu0 %529
    %531 = vadd.xlane.f32.xlu0 %v504
    %v532 = vpop.xlane.xlu0 %531
    %533 = vadd.xlane.f32.xlu0 %v507
    %v534 = vpop.xlane.xlu0 %533
    %535 = vadd.xlane.f32.xlu0 %v510
    %v536 = vpop.xlane.xlu0 %535
    %537 = vadd.xlane.f32.xlu0 %v513
    %v538 = vpop.xlane.xlu0 %537
    %v539 = vmul.f32 %v524, %v140
    %v540 = vmul.f32 %v526, %v140
    %v541 = vmul.f32 %v528, %v140
    %v542 = vmul.f32 %v530, %v140
    %v543 = vmul.f32 %v532, %v140
    %v544 = vmul.f32 %v534, %v140
    %v545 = vmul.f32 %v536, %v140
    %v546 = vmul.f32 %v538, %v140
    %v547 = vsub.f32 %v475, %v539
    %v548 = vsub.f32 %v478, %v540
    %v549 = vsub.f32 %v481, %v541
    %v550 = vsub.f32 %v484, %v542
    %v551 = vsub.f32 %v504, %v543
    %v552 = vsub.f32 %v507, %v544
    %v553 = vsub.f32 %v510, %v545
    %v554 = vsub.f32 %v513, %v546
    %v555 = vmul.f32 %v547, %v547
    %v556 = vmul.f32 %v548, %v548
    %v557 = vmul.f32 %v549, %v549
    %v558 = vmul.f32 %v550, %v550
    %v559 = vmul.f32 %v551, %v551
    %v560 = vmul.f32 %v552, %v552
    %v561 = vmul.f32 %v553, %v553
    %v562 = vmul.f32 %v554, %v554
    %563 = vadd.xlane.f32.xlu0 %v555
    %v564 = vpop.xlane.xlu0 %563
    %565 = vadd.xlane.f32.xlu0 %v556
    %v566 = vpop.xlane.xlu0 %565
    %567 = vadd.xlane.f32.xlu0 %v557
    %v568 = vpop.xlane.xlu0 %567
    %569 = vadd.xlane.f32.xlu0 %v558
    %v570 = vpop.xlane.xlu0 %569
    %571 = vadd.xlane.f32.xlu0 %v559
    %v572 = vpop.xlane.xlu0 %571
    %573 = vadd.xlane.f32.xlu0 %v560
    %v574 = vpop.xlane.xlu0 %573
    %575 = vadd.xlane.f32.xlu0 %v561
    %v576 = vpop.xlane.xlu0 %575
    %577 = vadd.xlane.f32.xlu0 %v562
    %v578 = vpop.xlane.xlu0 %577
    %v579 = vmul.f32 %v564, 0.007874016
    %v580 = vmul.f32 %v566, 0.007874016
    %v581 = vmul.f32 %v568, 0.007874016
    %v582 = vmul.f32 %v570, 0.007874016
    %v583 = vmul.f32 %v572, 0.007874016
    %v584 = vmul.f32 %v574, 0.007874016
    %v585 = vmul.f32 %v576, 0.007874016
    %v586 = vmul.f32 %v578, 0.007874016
    %v587 = vadd.f32 %v579, 1e-05
    %v588 = vadd.f32 %v580, 1e-05
    %v589 = vadd.f32 %v581, 1e-05
    %v590 = vadd.f32 %v582, 1e-05
    %v591 = vadd.f32 %v583, 1e-05
    %v592 = vadd.f32 %v584, 1e-05
    %v593 = vadd.f32 %v585, 1e-05
    %v594 = vadd.f32 %v586, 1e-05
    %v595 = vrsqrt.pop %v587
    %v596 = vmul.f32 %v595, %v587
    %v597 = vmul.f32 %v596, %v595
    %v598 = vmul.f32 0.5, %v597
    %v599 = vsub.f32 1.5, %v598
    %v600 = vmul.f32 %v595, %v599
    %vm601 = vweird.f32 %v587
    %vm602 = vweird.f32 %v595
    %vm603 = vmor %vm601, %vm602
    %v604 = vsel %vm603, %v595, %v600
    %v605 = vrsqrt.pop %v588
    %v606 = vmul.f32 %v605, %v588
    %v607 = vmul.f32 %v606, %v605
    %v608 = vmul.f32 0.5, %v607
    %v609 = vsub.f32 1.5, %v608
    %v610 = vmul.f32 %v605, %v609
    %vm611 = vweird.f32 %v588
    %vm612 = vweird.f32 %v605
    %vm613 = vmor %vm611, %vm612
    %v614 = vsel %vm613, %v605, %v610
    %v615 = vrsqrt.pop %v589
    %v616 = vmul.f32 %v615, %v589
    %v617 = vmul.f32 %v616, %v615
    %v618 = vmul.f32 0.5, %v617
    %v619 = vsub.f32 1.5, %v618
    %v620 = vmul.f32 %v615, %v619
    %vm621 = vweird.f32 %v589
    %vm622 = vweird.f32 %v615
    %vm623 = vmor %vm621, %vm622
    %v624 = vsel %vm623, %v615, %v620
    %v625 = vrsqrt.pop %v590
    %v626 = vmul.f32 %v625, %v590
    %v627 = vmul.f32 %v626, %v625
    %v628 = vmul.f32 0.5, %v627
    %v629 = vsub.f32 1.5, %v628
    %v630 = vmul.f32 %v625, %v629
    %vm631 = vweird.f32 %v590
    %vm632 = vweird.f32 %v625
    %vm633 = vmor %vm631, %vm632
    %v634 = vsel %vm633, %v625, %v630
    %v635 = vrsqrt.pop %v591
    %v636 = vmul.f32 %v635, %v591
    %v637 = vmul.f32 %v636, %v635
    %v638 = vmul.f32 0.5, %v637
    %v639 = vsub.f32 1.5, %v638
    %v640 = vmul.f32 %v635, %v639
    %vm641 = vweird.f32 %v591
    %vm642 = vweird.f32 %v635
    %vm643 = vmor %vm641, %vm642
    %v644 = vsel %vm643, %v635, %v640
    %v645 = vrsqrt.pop %v592
    %v646 = vmul.f32 %v645, %v592
    %v647 = vmul.f32 %v646, %v645
    %v648 = vmul.f32 0.5, %v647
    %v649 = vsub.f32 1.5, %v648
    %v650 = vmul.f32 %v645, %v649
    %vm651 = vweird.f32 %v592
    %vm652 = vweird.f32 %v645
    %vm653 = vmor %vm651, %vm652
    %v654 = vsel %vm653, %v645, %v650
    %v655 = vrsqrt.pop %v593
    %v656 = vmul.f32 %v655, %v593
    %v657 = vmul.f32 %v656, %v655
    %v658 = vmul.f32 0.5, %v657
    %v659 = vsub.f32 1.5, %v658
    %v660 = vmul.f32 %v655, %v659
    %vm661 = vweird.f32 %v593
    %vm662 = vweird.f32 %v655
    %vm663 = vmor %vm661, %vm662
    %v664 = vsel %vm663, %v655, %v660
    %v665 = vrsqrt.pop %v594
    %v666 = vmul.f32 %v665, %v594
    %v667 = vmul.f32 %v666, %v665
    %v668 = vmul.f32 0.5, %v667
    %v669 = vsub.f32 1.5, %v668
    %v670 = vmul.f32 %v665, %v669
    %vm671 = vweird.f32 %v594
    %vm672 = vweird.f32 %v665
    %vm673 = vmor %vm671, %vm672
    %v674 = vsel %vm673, %v665, %v670
    %v675 = vmul.f32 %v604, %v604
    %v676 = vmul.f32 %v614, %v614
    %v677 = vmul.f32 %v624, %v624
    %v678 = vmul.f32 %v634, %v634
    %v679 = vmul.f32 %v644, %v644
    %v680 = vmul.f32 %v654, %v654
    %v681 = vmul.f32 %v664, %v664
    %v682 = vmul.f32 %v674, %v674
    %v683 = vmul.f32 %v579, %v675
    %v684 = vmul.f32 %v580, %v676
    %v685 = vmul.f32 %v581, %v677
    %v686 = vmul.f32 %v582, %v678
    %v687 = vmul.f32 %v583, %v679
    %v688 = vmul.f32 %v584, %v680
    %v689 = vmul.f32 %v585, %v681
    %v690 = vmul.f32 %v586, %v682
    %v691 = vadd.f32 %v683, %v687
    %v692 = vadd.f32 %v684, %v688
    %v693 = vadd.f32 %v685, %v689
    %v694 = vadd.f32 %v686, %v690
    %v695 = vmul.f32 %v691, 0.49609375
    %v696 = vmul.f32 %v692, 0.49609375
    %v697 = vmul.f32 %v693, 0.49609375
    %v698 = vmul.f32 %v694, 0.49609375
    %v699 = vadd.f32 %v695, 1e-05
    %v700 = vadd.f32 %v696, 1e-05
    %v701 = vadd.f32 %v697, 1e-05
    %v702 = vadd.f32 %v698, 1e-05
    %v703 = vrsqrt.pop %v699
    %v704 = vmul.f32 %v703, %v699
    %v705 = vmul.f32 %v704, %v703
    %v706 = vmul.f32 0.5, %v705
    %v707 = vsub.f32 1.5, %v706
    %v708 = vmul.f32 %v703, %v707
    %vm709 = vweird.f32 %v699
    %vm710 = vweird.f32 %v703
    %vm711 = vmor %vm709, %vm710
    %v712 = vsel %vm711, %v703, %v708
    %v713 = vrsqrt.pop %v700
    %v714 = vmul.f32 %v713, %v700
    %v715 = vmul.f32 %v714, %v713
    %v716 = vmul.f32 0.5, %v715
    %v717 = vsub.f32 1.5, %v716
    %v718 = vmul.f32 %v713, %v717
    %vm719 = vweird.f32 %v700
    %vm720 = vweird.f32 %v713
    %vm721 = vmor %vm719, %vm720
    %v722 = vsel %vm721, %v713, %v718
    %v723 = vrsqrt.pop %v701
    %v724 = vmul.f32 %v723, %v701
    %v725 = vmul.f32 %v724, %v723
    %v726 = vmul.f32 0.5, %v725
    %v727 = vsub.f32 1.5, %v726
    %v728 = vmul.f32 %v723, %v727
    %vm729 = vweird.f32 %v701
    %vm730 = vweird.f32 %v723
    %vm731 = vmor %vm729, %vm730
    %v732 = vsel %vm731, %v723, %v728
    %v733 = vrsqrt.pop %v702
    %v734 = vmul.f32 %v733, %v702
    %v735 = vmul.f32 %v734, %v733
    %v736 = vmul.f32 0.5, %v735
    %v737 = vsub.f32 1.5, %v736
    %v738 = vmul.f32 %v733, %v737
    %vm739 = vweird.f32 %v702
    %vm740 = vweird.f32 %v733
    %vm741 = vmor %vm739, %vm740
    %v742 = vsel %vm741, %v733, %v738
    %v743 = vmul.f32 %v515, %v712
    %v744 = vmul.f32 %v516, %v722
    %v745 = vmul.f32 %v517, %v732
    %v746 = vmul.f32 %v518, %v742
    %v747 = vmul.f32 %v743, %v604
    %v748 = vmul.f32 %v744, %v614
    %v749 = vmul.f32 %v745, %v624
    %v750 = vmul.f32 %v746, %v634
    %v751 = vmul.f32 %v743, %v644
    %v752 = vmul.f32 %v744, %v654
    %v753 = vmul.f32 %v745, %v664
    %v754 = vmul.f32 %v746, %v674
    %756 = vset.pattern.permute.xlu0 0
    %757 = vperm.xlu0 %756, %v747
    %v758 = vpop.permute.xlu0 %757
    %761 = vset.pattern.permute.xlu0 0
    %762 = vperm.xlu0 %761, %v748
    %v763 = vpop.permute.xlu0 %762
    %766 = vset.pattern.permute.xlu0 0
    %767 = vperm.xlu0 %766, %v749
    %v768 = vpop.permute.xlu0 %767
    %771 = vset.pattern.permute.xlu0 0
    %772 = vperm.xlu0 %771, %v750
    %v773 = vpop.permute.xlu0 %772
    %776 = vset.pattern.permute.xlu0 0
    %777 = vperm.xlu0 %776, %v751
    %v778 = vpop.permute.xlu0 %777
    %781 = vset.pattern.permute.xlu0 0
    %782 = vperm.xlu0 %781, %v752
    %v783 = vpop.permute.xlu0 %782
    %786 = vset.pattern.permute.xlu0 0
    %787 = vperm.xlu0 %786, %v753
    %v788 = vpop.permute.xlu0 %787
    %791 = vset.pattern.permute.xlu0 0
    %792 = vperm.xlu0 %791, %v754
    %v793 = vpop.permute.xlu0 %792
    %v795 = vmul.f32 %v547, %v758
    %v796 = vmul.f32 %v548, %v763
    %v797 = vmul.f32 %v549, %v768
    %v798 = vmul.f32 %v550, %v773
    %v799 = vmul.f32 %v551, %v778
    %v800 = vmul.f32 %v552, %v783
    %v801 = vmul.f32 %v553, %v788
    %v802 = vmul.f32 %v554, %v793
    %804 = vset.pattern.permute.xlu0 0
    %805 = vperm.xlu0 %804, %v519
    %v806 = vpop.permute.xlu0 %805
    %809 = vset.pattern.permute.xlu0 0
    %810 = vperm.xlu0 %809, %v520
    %v811 = vpop.permute.xlu0 %810
    %814 = vset.pattern.permute.xlu0 0
    %815 = vperm.xlu0 %814, %v521
    %v816 = vpop.permute.xlu0 %815
    %819 = vset.pattern.permute.xlu0 0
    %820 = vperm.xlu0 %819, %v522
    %v821 = vpop.permute.xlu0 %820
    %v823 = vadd.f32 %v795, %v806
    %v824 = vadd.f32 %v796, %v811
    %v825 = vadd.f32 %v797, %v816
    %v826 = vadd.f32 %v798, %v821
    %v827 = vadd.f32 %v799, %v806
    %v828 = vadd.f32 %v800, %v811
    %v829 = vadd.f32 %v801, %v816
    %v830 = vadd.f32 %v802, %v821
    %v831 = vmax.f32 %v823, 0.0
    %v832 = vmax.f32 %v824, 0.0
    %v833 = vmax.f32 %v825, 0.0
    %v834 = vmax.f32 %v826, 0.0
    %v835 = vmax.f32 %v827, 0.0
    %v836 = vmax.f32 %v828, 0.0
    %v837 = vmax.f32 %v829, 0.0
    %v838 = vmax.f32 %v830, 0.0
    %v839 = vadd.f32 %v831, %v27
    %v840 = vadd.f32 %v832, %v28
    %v841 = vadd.f32 %v833, %v29
    %v842 = vadd.f32 %v834, %v30
    %v843 = vadd.f32 %v835, %v31
    %v844 = vadd.f32 %v836, %v32
    %v845 = vadd.f32 %v837, %v33
    %v846 = vadd.f32 %v838, %v34
    %847 = vst [vmem:[#allocation2] sm:$0xff] %v839
    %848 = vst [vmem:[#allocation2 + $0x8] sm:$0xff] %v840
    %849 = vst [vmem:[#allocation2 + $0x10] sm:$0xff] %v841
    %850 = vst [vmem:[#allocation2 + $0x18] sm:$0xff] %v842
    %851 = vst [vmem:[#allocation2 + $0x20] sm:$0xff] %v843
    %852 = vst [vmem:[#allocation2 + $0x28] sm:$0xff] %v844
    %853 = vst [vmem:[#allocation2 + $0x30] sm:$0xff] %v845
    %854 = vst [vmem:[#allocation2 + $0x38] sm:$0xff] %v846
    // Predicated region
    $region30: #{resnet_block_pallas.1} parent=1 // pred_check
      _
    $region31: #{resnet_block_pallas.1} parent=1 // pred_check_branch
      %856 = sbr.rel (0) target = $region33
    $region32: #{resnet_block_pallas.1} parent=1 // pred_region
      %858 = vsyncadd [#allocation3], 0
      %s859 = sshll.u32 [#allocation2], 4
      %s860 = int_to_ptr.vmem [resolvable:$true] %s859
      %s861 = sshll.u32 %s7, 4
      %s862 = int_to_ptr.hbm [resolvable:$true] %s861
      %867 = dma.vmem_to_hbm [thread:$0]  %s860, 1024, %s862, [#allocation3], 128, 128, 8
    $region33: #{resnet_block_pallas.1} parent=1 // pred_fallthru
      _
    // Predicated region
    $region34: #{resnet_block_pallas.1} parent=1 // pred_check
      _
    $region35: #{resnet_block_pallas.1} parent=1 // pred_check_branch
      %869 = sbr.rel (0) target = $region37
    $region36: #{resnet_block_pallas.1} parent=1 // pred_region
      %871 = dma.done [#allocation3], 1024
    $region37: #{resnet_block_pallas.1} parent=1 // pred_fallthru
      _
    %872 = vsyncpa [#allocation3], 1

</llo_original>
